<compile_context>
chip_gen: v6e
topology: v6e:2x2x1
jax: 0.10.0
libtpu: 0.0.40
codegen_flags: <defaults>
</compile_context>

<pallas_src>
import jax
import jax.numpy as jnp
from jax.experimental import pallas as pl
from jax.experimental.pallas import tpu as pltpu


def _round_up(n, m):
    return ((n + m - 1) // m) * m


def class_prediction_loss(x, w1, b1, w2, b2, target):
    """x: (B, n_node) f32; target: (B,) int32 class indices. Returns scalar f32 loss."""
    b_dim, n_node = x.shape
    n_hidden = w1.shape[1]
    n_classes = w2.shape[1]

    # Tile selection: as few grid steps as possible (per-step overhead dominates this
    # kernel), but keep >=2 parallel tiles once the batch is big enough so the v7x
    # megacore can split the grid across both TensorCores.
    max_tb = 2048
    if b_dim <= 64:
        num_tiles = 1
    else:
        num_tiles = max(2, pl.cdiv(b_dim, max_tb))
    tb = _round_up(pl.cdiv(b_dim, num_tiles), 8)
    padded_b = tb * num_tiles

    pad = padded_b - b_dim
    if pad:
        x = jnp.pad(x, ((0, pad), (0, 0)))
        target = jnp.pad(target, (0, pad))

    # Resident operands: W1 in bf16 (first matmul runs bf16 on the MXU), W2 and the
    # biases in f32.  x stays f32 on the wire; it is cast in-kernel.
    x_f32 = x.astype(jnp.float32)
    w1_bf = w1.astype(jnp.bfloat16)
    w2_f32 = w2.astype(jnp.float32)
    b1_2d = b1.reshape(1, n_hidden).astype(jnp.float32)
    b2_2d = b2.reshape(1, n_classes).astype(jnp.float32)
    tgt_2d = target.reshape(padded_b, 1).astype(jnp.int32)

    def kernel(x_ref, w1_ref, b1_ref, w2_ref, b2_ref, tgt_ref, loss_ref):
        # In-kernel bf16 cast of the x tile (VPU work hidden under the DMA/MXU).
        x_bf = x_ref[...].astype(jnp.bfloat16)

        # Linear 1 + Tanh (bf16 MXU, f32 accumulate; tanh in f32).
        h = jnp.tanh(
            jnp.dot(x_bf, w1_ref[...], preferred_element_type=jnp.float32)
            + b1_ref[...]
        )

        # Linear 2 (f32; trivial MXU work at these shapes).
        logits = (
            jnp.dot(h, w2_ref[...], preferred_element_type=jnp.float32)
            + b2_ref[...]
        )

        # Softmax(dim=1).
        m = jnp.max(logits, axis=1, keepdims=True)
        e = jnp.exp(logits - m)
        p = e / jnp.sum(e, axis=1, keepdims=True)

        # CrossEntropyLoss applied to p (PyTorch semantics: log_softmax over p + NLL).
        # p is in (0, 1], so exp(p) <= e -> no max-trick needed for this logsumexp.
        lse = jnp.log(jnp.sum(jnp.exp(p), axis=1, keepdims=True))            # (tb, 1)
        classes = jax.lax.broadcasted_iota(jnp.int32, p.shape, dimension=1)  # (tb, C)
        picked = jnp.sum(jnp.where(classes == tgt_ref[...], p, 0.0),
                         axis=1, keepdims=True)                              # (tb, 1)
        per_example = lse - picked                                           # (tb, 1)

        # Mask padded batch rows and reduce to a single partial sum for this tile.
        row = jax.lax.broadcasted_iota(jnp.int32, per_example.shape, dimension=0)
        global_row = row + pl.program_id(0) * tb
        masked = jnp.where(global_row < b_dim, per_example, 0.0)
        loss_ref[0] = jnp.sum(masked, axis=0, keepdims=True)                 # (1, 1)

    partials = pl.pallas_call(
        kernel,
        out_shape=jax.ShapeDtypeStruct((num_tiles, 1, 1), jnp.float32),
        grid=(num_tiles,),
        in_specs=[
            pl.BlockSpec((tb, n_node), lambda i: (i, 0)),           # x tile (f32)
            pl.BlockSpec((n_node, n_hidden), lambda i: (0, 0)),     # W1 resident (bf16)
            pl.BlockSpec((1, n_hidden), lambda i: (0, 0)),          # b1 resident
            pl.BlockSpec((n_hidden, n_classes), lambda i: (0, 0)),  # W2 resident (f32)
            pl.BlockSpec((1, n_classes), lambda i: (0, 0)),         # b2 resident
            pl.BlockSpec((tb, 1), lambda i: (i, 0)),                # target tile
        ],
        out_specs=pl.BlockSpec((1, 1, 1), lambda i: (i, 0, 0)),     # per-tile partial sum
        compiler_params=pltpu.CompilerParams(
            dimension_semantics=("parallel",),
        ),
    )(x_f32, w1_bf, b1_2d, w2_f32, b2_2d, tgt_2d)

    # Tiny final reduction: num_tiles scalars -> mean over the valid batch rows.
    return jnp.sum(partials) / jnp.float32(b_dim)


def init_params(key, n_node, n_hidden, n_classes):
    """Deterministic init mirroring the module: xavier_normal_ weights, normal_ biases."""
    k1, k2, k3, k4 = jax.random.split(key, 4)
    std1 = (2.0 / (n_node + n_hidden)) ** 0.5
    std2 = (2.0 / (n_hidden + n_classes)) ** 0.5
    # Stored as (in, out) == transpose of PyTorch's (out, in) weight layout.
    w1 = jax.random.normal(k1, (n_node, n_hidden), jnp.float32) * std1
    b1 = jax.random.normal(k2, (n_hidden,), jnp.float32)
    w2 = jax.random.normal(k3, (n_hidden, n_classes), jnp.float32) * std2
    b2 = jax.random.normal(k4, (n_classes,), jnp.float32)
    return w1, b1, w2, b2


if __name__ == "__main__":
    # Small shapes consistent with the module's forward; B=200 exercises padding,
    # row masking, and the 2-tile parallel grid.
    B, N_NODE, N_HIDDEN, N_CLASSES = 200, 32, 32, 8

    key = jax.random.PRNGKey(0)
    kx, kt, kp = jax.random.split(key, 3)

    x = jax.random.normal(kx, (B, N_NODE), jnp.float32)
    target = jax.random.randint(kt, (B,), 0, N_CLASSES, dtype=jnp.int32)
    w1, b1, w2, b2 = init_params(kp, N_NODE, N_HIDDEN, N_CLASSES)

    loss = class_prediction_loss(x, w1, b1, w2, b2, target)
    jax.block_until_ready(loss)

    # Pure-JAX f32 reference of the module's (softmax-then-CrossEntropyLoss) semantics.
    h_ref = jnp.tanh(x @ w1 + b1)
    p_ref = jax.nn.softmax(h_ref @ w2 + b2, axis=1)
    logp = jax.nn.log_softmax(p_ref, axis=1)
    ref = -jnp.mean(logp[jnp.arange(B), target])
    # Tolerance covers the bf16 first-matmul operands (everything else is f32/exact).
    assert jnp.allclose(loss, ref, atol=1e-2, rtol=1e-2), (loss, ref)

    print("KERNEL_OK")
</pallas_src>

<mosaic_0001>
module attributes {stable_mosaic.version = 11 : i64} {
  func.func @kernel(%arg0: i32, %arg1: memref<104x32xf32, #tpu.memory_space<vmem>>, %arg2: memref<32x32xbf16, #tpu.memory_space<vmem>>, %arg3: memref<1x32xf32, #tpu.memory_space<vmem>>, %arg4: memref<32x8xf32, #tpu.memory_space<vmem>>, %arg5: memref<1x8xf32, #tpu.memory_space<vmem>>, %arg6: memref<104x1xi32, #tpu.memory_space<vmem>>, %arg7: memref<1x1x1xf32, #tpu.memory_space<vmem>>) attributes {dimension_semantics = [#tpu.dimension_semantics<parallel>], iteration_bounds = array<i64: 2>, scalar_prefetch = 0 : i64, scratch_operands = 0 : i64, tpu.core_type = #tpu.core_type<tc>, window_params = [{transform_indices = @transform_0, window_bounds = array<i64: 104, 32>}, {pipeline_mode = #tpu.pipeline_mode<synchronous>, transform_indices = @transform_1, window_bounds = array<i64: 32, 32>}, {pipeline_mode = #tpu.pipeline_mode<synchronous>, transform_indices = @transform_2, window_bounds = array<i64: 1, 32>}, {pipeline_mode = #tpu.pipeline_mode<synchronous>, transform_indices = @transform_3, window_bounds = array<i64: 32, 8>}, {pipeline_mode = #tpu.pipeline_mode<synchronous>, transform_indices = @transform_4, window_bounds = array<i64: 1, 8>}, {transform_indices = @transform_5, window_bounds = array<i64: 104, 1>}, {transform_indices = @transform_6, window_bounds = array<i64: 1, 1, 1>}]} {
    %c0 = arith.constant 0 : index
    %c0_0 = arith.constant 0 : index
    %0 = vector.load %arg1[%c0, %c0_0] : memref<104x32xf32, #tpu.memory_space<vmem>>, vector<104x32xf32>
    %1 = arith.truncf %0 : vector<104x32xf32> to vector<104x32xbf16>
    %c0_1 = arith.constant 0 : index
    %c0_2 = arith.constant 0 : index
    %2 = vector.load %arg2[%c0_1, %c0_2] : memref<32x32xbf16, #tpu.memory_space<vmem>>, vector<32x32xbf16>
    %cst = arith.constant dense<0.000000e+00> : vector<104x32xf32>
    %3 = tpu.matmul %1, %2, %cst {dimension_numbers = #tpu.dot_dimension_numbers<[1], [0], [0], [1], [0, 0, 1, 1], [], []>} : vector<104x32xbf16>, vector<32x32xbf16>, vector<104x32xf32> -> vector<104x32xf32>
    %c0_3 = arith.constant 0 : index
    %c0_4 = arith.constant 0 : index
    %4 = vector.load %arg3[%c0_3, %c0_4] : memref<1x32xf32, #tpu.memory_space<vmem>>, vector<1x32xf32>
    %5 = vector.broadcast %4 : vector<1x32xf32> to vector<104x32xf32>
    %6 = arith.addf %3, %5 : vector<104x32xf32>
    %7 = math.tanh %6 : vector<104x32xf32>
    %c0_5 = arith.constant 0 : index
    %c0_6 = arith.constant 0 : index
    %8 = vector.load %arg4[%c0_5, %c0_6] : memref<32x8xf32, #tpu.memory_space<vmem>>, vector<32x8xf32>
    %cst_7 = arith.constant dense<0.000000e+00> : vector<104x8xf32>
    %9 = tpu.matmul %7, %8, %cst_7 {dimension_numbers = #tpu.dot_dimension_numbers<[1], [0], [0], [1], [0, 0, 1, 1], [], []>} : vector<104x32xf32>, vector<32x8xf32>, vector<104x8xf32> -> vector<104x8xf32>
    %c0_8 = arith.constant 0 : index
    %c0_9 = arith.constant 0 : index
    %10 = vector.load %arg5[%c0_8, %c0_9] : memref<1x8xf32, #tpu.memory_space<vmem>>, vector<1x8xf32>
    %11 = vector.broadcast %10 : vector<1x8xf32> to vector<104x8xf32>
    %12 = arith.addf %9, %11 : vector<104x8xf32>
    %cst_10 = arith.constant dense<0xFF800000> : vector<104xf32>
    %13 = vector.multi_reduction <maximumf>, %12, %cst_10 [1] : vector<104x8xf32> to vector<104xf32>
    %14 = vector.shape_cast %13 : vector<104xf32> to vector<104x1xf32>
    %15 = vector.broadcast %14 : vector<104x1xf32> to vector<104x8xf32>
    %16 = arith.subf %12, %15 : vector<104x8xf32>
    %17 = math.exp %16 : vector<104x8xf32>
    %cst_11 = arith.constant dense<0.000000e+00> : vector<104xf32>
    %18 = vector.multi_reduction <add>, %17, %cst_11 [1] : vector<104x8xf32> to vector<104xf32>
    %19 = vector.shape_cast %18 : vector<104xf32> to vector<104x1xf32>
    %20 = vector.broadcast %19 : vector<104x1xf32> to vector<104x8xf32>
    %21 = arith.divf %17, %20 : vector<104x8xf32>
    %22 = math.exp %21 : vector<104x8xf32>
    %cst_12 = arith.constant dense<0.000000e+00> : vector<104xf32>
    %23 = vector.multi_reduction <add>, %22, %cst_12 [1] : vector<104x8xf32> to vector<104xf32>
    %24 = vector.shape_cast %23 : vector<104xf32> to vector<104x1xf32>
    %25 = math.log %24 : vector<104x1xf32>
    %26 = tpu.iota {dimensions = array<i32: 1>} : vector<104x8xi32>
    %c0_13 = arith.constant 0 : index
    %c0_14 = arith.constant 0 : index
    %27 = vector.load %arg6[%c0_13, %c0_14] : memref<104x1xi32, #tpu.memory_space<vmem>>, vector<104x1xi32>
    %28 = vector.broadcast %27 : vector<104x1xi32> to vector<104x8xi32>
    %29 = arith.cmpi eq, %26, %28 : vector<104x8xi32>
    %cst_15 = arith.constant 0.000000e+00 : f32
    %30 = vector.broadcast %cst_15 : f32 to vector<104x8xf32>
    %31 = arith.select %29, %21, %30 : vector<104x8xi1>, vector<104x8xf32>
    %cst_16 = arith.constant dense<0.000000e+00> : vector<104xf32>
    %32 = vector.multi_reduction <add>, %31, %cst_16 [1] : vector<104x8xf32> to vector<104xf32>
    %33 = vector.shape_cast %32 : vector<104xf32> to vector<104x1xf32>
    %34 = arith.subf %25, %33 : vector<104x1xf32>
    %35 = tpu.iota {dimensions = array<i32: 0>} : vector<104x1xi32>
    %c104_i32 = arith.constant 104 : i32
    %36 = arith.muli %arg0, %c104_i32 : i32
    %37 = vector.broadcast %36 : i32 to vector<104x1xi32>
    %38 = arith.addi %35, %37 : vector<104x1xi32>
    %c200_i32 = arith.constant 200 : i32
    %39 = vector.broadcast %c200_i32 : i32 to vector<104x1xi32>
    %40 = arith.cmpi slt, %38, %39 : vector<104x1xi32>
    %cst_17 = arith.constant 0.000000e+00 : f32
    %41 = vector.broadcast %cst_17 : f32 to vector<104x1xf32>
    %42 = arith.select %40, %34, %41 : vector<104x1xi1>, vector<104x1xf32>
    %cst_18 = arith.constant dense<0.000000e+00> : vector<1xf32>
    %43 = vector.multi_reduction <add>, %42, %cst_18 [0] : vector<104x1xf32> to vector<1xf32>
    %44 = vector.shape_cast %43 : vector<1xf32> to vector<1x1xf32>
    %c0_19 = arith.constant 0 : index
    %c0_20 = arith.constant 0 : index
    %c0_21 = arith.constant 0 : index
    %45 = vector.load %arg7[%c0_19, %c0_20, %c0_21] : memref<1x1x1xf32, #tpu.memory_space<vmem>>, vector<1x1x1xf32>
    %46 = vector.shape_cast %45 : vector<1x1x1xf32> to vector<1x1xf32>
    %47 = vector.shape_cast %44 : vector<1x1xf32> to vector<1x1x1xf32>
    tpu.vector_store %arg7[%c0_19, %c0_20, %c0_21], %47 {strides = array<i32>} : memref<1x1x1xf32, #tpu.memory_space<vmem>>, vector<1x1x1xf32>,
    return
  }
  func.func @transform_0(%arg0: i32) -> (i32, i32) {
    %c0_i32 = arith.constant 0 : i32
    %c0_i32_0 = arith.constant 0 : i32
    return %arg0, %c0_i32 : i32, i32
  }
  func.func @transform_1(%arg0: i32) -> (i32, i32) {
    %c0_i32 = arith.constant 0 : i32
    %c0_i32_0 = arith.constant 0 : i32
    %c0_i32_1 = arith.constant 0 : i32
    return %c0_i32, %c0_i32_0 : i32, i32
  }
  func.func @transform_2(%arg0: i32) -> (i32, i32) {
    %c0_i32 = arith.constant 0 : i32
    %c0_i32_0 = arith.constant 0 : i32
    %c0_i32_1 = arith.constant 0 : i32
    return %c0_i32, %c0_i32_0 : i32, i32
  }
  func.func @transform_3(%arg0: i32) -> (i32, i32) {
    %c0_i32 = arith.constant 0 : i32
    %c0_i32_0 = arith.constant 0 : i32
    %c0_i32_1 = arith.constant 0 : i32
    return %c0_i32, %c0_i32_0 : i32, i32
  }
  func.func @transform_4(%arg0: i32) -> (i32, i32) {
    %c0_i32 = arith.constant 0 : i32
    %c0_i32_0 = arith.constant 0 : i32
    %c0_i32_1 = arith.constant 0 : i32
    return %c0_i32, %c0_i32_0 : i32, i32
  }
  func.func @transform_5(%arg0: i32) -> (i32, i32) {
    %c0_i32 = arith.constant 0 : i32
    %c0_i32_0 = arith.constant 0 : i32
    return %arg0, %c0_i32 : i32, i32
  }
  func.func @transform_6(%arg0: i32) -> (i32, i32, i32) {
    %c0_i32 = arith.constant 0 : i32
    %c0_i32_0 = arith.constant 0 : i32
    %c0_i32_1 = arith.constant 0 : i32
    return %arg0, %c0_i32, %c0_i32_0 : i32, i32, i32
  }
}

</mosaic_0001>

<llo_original>
// kernel: tpu_custom_call.1
$region0: #{tpu_custom_call.1}
  #allocation0 [shape = 'u32[]', space=smem, size = 0x4, offset = 0x4, fixed_abs, tag = 'smem constant byte address 0x4 - core index']
  #allocation1 [shape = 'u32[144,128]{1,0:T(1,128)}', space=vmem, size = 0x12000, scoped, tag = 'internal scratch']
  %s0 = inlined_call_operand.vmem [shape: f32[208,32], index: 0, kind: input, shape index: {}]
  %s1 = inlined_call_operand.vmem [shape: bf16[32,32], index: 1, kind: input, shape index: {}]
  %s2 = inlined_call_operand.vmem [shape: f32[1,32], index: 2, kind: input, shape index: {}]
  %s3 = inlined_call_operand.vmem [shape: f32[32,8], index: 3, kind: input, shape index: {}]
  %s4 = inlined_call_operand.vmem [shape: f32[1,8], index: 4, kind: input, shape index: {}]
  %s5 = inlined_call_operand.vmem [shape: s32[208,1], index: 5, kind: input, shape index: {}]
  %s6 = inlined_call_operand.vmem [shape: f32[2,1,1], index: 6, kind: output, shape index: {}]
  %s7 = sld [smem:[#allocation0]]
  $region57: #{tpu_custom_call.1} parent=0
    _
  %s9 = ssub.s32 1, %s7
  %s10 = scalar_select 0, %s9, %s7
  loop: start=0, step=1, limit=4
  $region2: #{tpu_custom_call.1} parent=0 // loop_pre_header
    _
  $region3: #{tpu_custom_call.1} parent=0 // loop_header
    %s12 = sphi 0, %s16
    %p13 = scmp.ge.s32.totalorder %s12, 4
    %s22 = sphi 0, %s24
    %s25 = sphi 0, %s22
    %s26 = sphi 0, %s25
    %s42 = sphi 0, %s26
    %s46 = sphi 0, %s46
    %s48 = sphi 0, %s46
    %s49 = sphi 0, %s48
    %s63 = sphi 0, %s49
    %s67 = sphi 0, %s67
    %s69 = sphi 0, %s67
    %s70 = sphi 0, %s69
    %s84 = sphi 0, %s70
    %s88 = sphi 0, %s88
    %s90 = sphi 0, %s88
    %s91 = sphi 0, %s90
    %s105 = sphi 0, %s91
    %s109 = sphi 0, %s109
    %s111 = sphi 0, %s109
    %s112 = sphi 0, %s111
    %s126 = sphi 0, %s112
    %s132 = sphi 0, %s134
    %s135 = sphi 0, %s132
    %s136 = sphi 0, %s135
    %s152 = sphi 0, %s136
    %s158 = sphi 0, %s160
    %s161 = sphi 0, %s158
    %s162 = sphi 0, %s161
    %s178 = sphi 0, %s162
  $region4: #{tpu_custom_call.1} parent=0 // loop_header_branch
    %15 = sbr.rel (%p13) target = $region8
  $region5: #{tpu_custom_call.1} parent=0 // loop_body
    %s17 = ssub.s32 %s12, 1
    %s18 = ssub.s32 %s12, 2
    %s19 = sadd.s32 %s12, 1
    %s20 = ssub.s32 %s12, %s19
    %p21 = scmp.eq.s32.totalorder %s20, 0
    %s23 = sadd.s32 %s22, 1
    %s24 = scalar_select %p21, %s22, %s23
    %p27 = pneg %p21
    %p28 = scmp.eq.s32.totalorder %s12, 1
    %p29 = por %p27, %p28
    %p30 = scmp.ne.s32.totalorder %s22, %s25
    %p31 = scmp.eq.s32.totalorder %s12, 0
    %p32 = por %p30, %p31
    %p33 = scmp.ne.s32.totalorder %s22, %s25
    %p34 = scmp.eq.s32.totalorder %s17, 1
    %p35 = por %p33, %p34
    %p36 = scmp.ne.s32.totalorder %s25, %s26
    %p37 = scmp.eq.s32.totalorder %s17, 0
    %p38 = por %p36, %p37
    %p39 = scmp.ne.s32.totalorder %s25, %s26
    %p40 = scmp.eq.s32.totalorder %s18, 1
    %p41 = por %p39, %p40
    %p43 = scmp.ne.s32.totalorder %s26, %s42
    %p44 = scmp.eq.s32.totalorder %s18, 0
    %p45 = por %p43, %p44
    %s47 = sadd.s32 %s46, 1
    %p50 = scmp.eq.s32.totalorder %s12, 1
    %p51 = scmp.ne.s32.totalorder %s46, %s48
    %p52 = scmp.eq.s32.totalorder %s12, 0
    %p53 = por %p51, %p52
    %p54 = scmp.ne.s32.totalorder %s46, %s48
    %p55 = scmp.eq.s32.totalorder %s17, 1
    %p56 = por %p54, %p55
    %p57 = scmp.ne.s32.totalorder %s48, %s49
    %p58 = scmp.eq.s32.totalorder %s17, 0
    %p59 = por %p57, %p58
    %p60 = scmp.ne.s32.totalorder %s48, %s49
    %p61 = scmp.eq.s32.totalorder %s18, 1
    %p62 = por %p60, %p61
    %p64 = scmp.ne.s32.totalorder %s49, %s63
    %p65 = scmp.eq.s32.totalorder %s18, 0
    %p66 = por %p64, %p65
    %s68 = sadd.s32 %s67, 1
    %p71 = scmp.eq.s32.totalorder %s12, 1
    %p72 = scmp.ne.s32.totalorder %s67, %s69
    %p73 = scmp.eq.s32.totalorder %s12, 0
    %p74 = por %p72, %p73
    %p75 = scmp.ne.s32.totalorder %s67, %s69
    %p76 = scmp.eq.s32.totalorder %s17, 1
    %p77 = por %p75, %p76
    %p78 = scmp.ne.s32.totalorder %s69, %s70
    %p79 = scmp.eq.s32.totalorder %s17, 0
    %p80 = por %p78, %p79
    %p81 = scmp.ne.s32.totalorder %s69, %s70
    %p82 = scmp.eq.s32.totalorder %s18, 1
    %p83 = por %p81, %p82
    %p85 = scmp.ne.s32.totalorder %s70, %s84
    %p86 = scmp.eq.s32.totalorder %s18, 0
    %p87 = por %p85, %p86
    %s89 = sadd.s32 %s88, 1
    %p92 = scmp.eq.s32.totalorder %s12, 1
    %p93 = scmp.ne.s32.totalorder %s88, %s90
    %p94 = scmp.eq.s32.totalorder %s12, 0
    %p95 = por %p93, %p94
    %p96 = scmp.ne.s32.totalorder %s88, %s90
    %p97 = scmp.eq.s32.totalorder %s17, 1
    %p98 = por %p96, %p97
    %p99 = scmp.ne.s32.totalorder %s90, %s91
    %p100 = scmp.eq.s32.totalorder %s17, 0
    %p101 = por %p99, %p100
    %p102 = scmp.ne.s32.totalorder %s90, %s91
    %p103 = scmp.eq.s32.totalorder %s18, 1
    %p104 = por %p102, %p103
    %p106 = scmp.ne.s32.totalorder %s91, %s105
    %p107 = scmp.eq.s32.totalorder %s18, 0
    %p108 = por %p106, %p107
    %s110 = sadd.s32 %s109, 1
    %p113 = scmp.eq.s32.totalorder %s12, 1
    %p114 = scmp.ne.s32.totalorder %s109, %s111
    %p115 = scmp.eq.s32.totalorder %s12, 0
    %p116 = por %p114, %p115
    %p117 = scmp.ne.s32.totalorder %s109, %s111
    %p118 = scmp.eq.s32.totalorder %s17, 1
    %p119 = por %p117, %p118
    %p120 = scmp.ne.s32.totalorder %s111, %s112
    %p121 = scmp.eq.s32.totalorder %s17, 0
    %p122 = por %p120, %p121
    %p123 = scmp.ne.s32.totalorder %s111, %s112
    %p124 = scmp.eq.s32.totalorder %s18, 1
    %p125 = por %p123, %p124
    %p127 = scmp.ne.s32.totalorder %s112, %s126
    %p128 = scmp.eq.s32.totalorder %s18, 0
    %p129 = por %p127, %p128
    %s130 = ssub.s32 %s12, %s19
    %p131 = scmp.eq.s32.totalorder %s130, 0
    %s133 = sadd.s32 %s132, 1
    %s134 = scalar_select %p131, %s132, %s133
    %p137 = pneg %p131
    %p138 = scmp.eq.s32.totalorder %s12, 1
    %p139 = por %p137, %p138
    %p140 = scmp.ne.s32.totalorder %s132, %s135
    %p141 = scmp.eq.s32.totalorder %s12, 0
    %p142 = por %p140, %p141
    %p143 = scmp.ne.s32.totalorder %s132, %s135
    %p144 = scmp.eq.s32.totalorder %s17, 1
    %p145 = por %p143, %p144
    %p146 = scmp.ne.s32.totalorder %s135, %s136
    %p147 = scmp.eq.s32.totalorder %s17, 0
    %p148 = por %p146, %p147
    %p149 = scmp.ne.s32.totalorder %s135, %s136
    %p150 = scmp.eq.s32.totalorder %s18, 1
    %p151 = por %p149, %p150
    %p153 = scmp.ne.s32.totalorder %s136, %s152
    %p154 = scmp.eq.s32.totalorder %s18, 0
    %p155 = por %p153, %p154
    %s156 = ssub.s32 %s12, %s19
    %p157 = scmp.eq.s32.totalorder %s156, 0
    %s159 = sadd.s32 %s158, 1
    %s160 = scalar_select %p157, %s158, %s159
    %p163 = pneg %p157
    %p164 = scmp.eq.s32.totalorder %s12, 1
    %p165 = por %p163, %p164
    %p166 = scmp.ne.s32.totalorder %s158, %s161
    %p167 = scmp.eq.s32.totalorder %s12, 0
    %p168 = por %p166, %p167
    %p169 = scmp.ne.s32.totalorder %s158, %s161
    %p170 = scmp.eq.s32.totalorder %s17, 1
    %p171 = por %p169, %p170
    %p172 = scmp.ne.s32.totalorder %s161, %s162
    %p173 = scmp.eq.s32.totalorder %s17, 0
    %p174 = por %p172, %p173
    %p175 = scmp.ne.s32.totalorder %s161, %s162
    %p176 = scmp.eq.s32.totalorder %s18, 1
    %p177 = por %p175, %p176
    %p179 = scmp.ne.s32.totalorder %s162, %s178
    %p180 = scmp.eq.s32.totalorder %s18, 0
    %p181 = por %p179, %p180
    %p182 = scmp.le.s32.totalorder 1, %s12
    %p183 = scmp.lt.s32.totalorder %s12, 3
    %p184 = pnand %p182, %p183
    %p185 = pneg %p184
    // Predicated region
    $region9: #{tpu_custom_call.1} parent=5 // pred_check
      _
    $region10: #{tpu_custom_call.1} parent=5 // pred_check_branch
      %187 = sbr.rel (%p184) target = $region12
    $region11: #{tpu_custom_call.1} parent=5 // pred_region
      %s188 = ssub.s32 %s12, 1
      // Predicated region
      $region13: #{tpu_custom_call.1} parent=11 // pred_check
        %p189 = pneg %p59
      $region14: #{tpu_custom_call.1} parent=11 // pred_check_branch
        %191 = sbr.rel (%p189) target = $region16
      $region15: #{tpu_custom_call.1} parent=11 // pred_region
        _
      $region16: #{tpu_custom_call.1} parent=11 // pred_fallthru
        _
      // Predicated region
      $region17: #{tpu_custom_call.1} parent=11 // pred_check
        %p192 = pneg %p80
      $region18: #{tpu_custom_call.1} parent=11 // pred_check_branch
        %194 = sbr.rel (%p192) target = $region20
      $region19: #{tpu_custom_call.1} parent=11 // pred_region
        _
      $region20: #{tpu_custom_call.1} parent=11 // pred_fallthru
        _
      // Predicated region
      $region21: #{tpu_custom_call.1} parent=11 // pred_check
        %p195 = pneg %p101
      $region22: #{tpu_custom_call.1} parent=11 // pred_check_branch
        %197 = sbr.rel (%p195) target = $region24
      $region23: #{tpu_custom_call.1} parent=11 // pred_region
        _
      $region24: #{tpu_custom_call.1} parent=11 // pred_fallthru
        _
      // Predicated region
      $region25: #{tpu_custom_call.1} parent=11 // pred_check
        %p198 = pneg %p122
      $region26: #{tpu_custom_call.1} parent=11 // pred_check_branch
        %200 = sbr.rel (%p198) target = $region28
      $region27: #{tpu_custom_call.1} parent=11 // pred_region
        _
      $region28: #{tpu_custom_call.1} parent=11 // pred_fallthru
        _
    $region12: #{tpu_custom_call.1} parent=5 // pred_fallthru
      _
    %p201 = scmp.lt.s32.totalorder %s12, 2
    // Predicated region
    $region29: #{tpu_custom_call.1} parent=5 // pred_check
      %p202 = pneg %p201
    $region30: #{tpu_custom_call.1} parent=5 // pred_check_branch
      %204 = sbr.rel (%p202) target = $region32
    $region31: #{tpu_custom_call.1} parent=5 // pred_region
      // Predicated region
      $region33: #{tpu_custom_call.1} parent=31 // pred_check
        %p205 = pneg %p32
      $region34: #{tpu_custom_call.1} parent=31 // pred_check_branch
        %207 = sbr.rel (%p205) target = $region36
      $region35: #{tpu_custom_call.1} parent=31 // pred_region
        %s208 = smul.u32 13, %s12
        %p209 = scmp.lt.s32.totalorder %s208, 25
        %s210 = scalar_select %p209, %s208, 25
        %s211 = smul.addr %s210, 8
        %s212 = scalar_lea.vmem %s0, %s211
        %s213 = smul.u32 13, %s12
      $region36: #{tpu_custom_call.1} parent=31 // pred_fallthru
        _
      // Predicated region
      $region37: #{tpu_custom_call.1} parent=31 // pred_check
        %p214 = pneg %p142
      $region38: #{tpu_custom_call.1} parent=31 // pred_check_branch
        %216 = sbr.rel (%p214) target = $region40
      $region39: #{tpu_custom_call.1} parent=31 // pred_region
        %s217 = smul.u32 13, %s12
        %p218 = scmp.lt.s32.totalorder %s217, 25
        %s219 = scalar_select %p218, %s217, 25
        %s220 = smul.addr %s219, 8
        %s221 = scalar_lea.vmem %s5, %s220
        %s222 = smul.u32 13, %s12
      $region40: #{tpu_custom_call.1} parent=31 // pred_fallthru
        _
    $region32: #{tpu_custom_call.1} parent=5 // pred_fallthru
      _
    %p223 = scmp.le.s32.totalorder 1, %s12
    %p224 = scmp.lt.s32.totalorder %s12, 3
    %p225 = pnand %p223, %p224
    %p226 = pneg %p225
    // Predicated region
    $region41: #{tpu_custom_call.1} parent=5 // pred_check
      _
    $region42: #{tpu_custom_call.1} parent=5 // pred_check_branch
      %228 = sbr.rel (%p225) target = $region44
    $region43: #{tpu_custom_call.1} parent=5 // pred_region
      %s229 = ssub.s32 %s12, 1
      %s230 = smul.u32 13, %s17
      %p231 = scmp.lt.s32.totalorder %s230, 25
      %s232 = scalar_select %p231, %s230, 25
      %s233 = smul.addr %s232, 8
      %s234 = scalar_lea.vmem %s0, %s233
      %p235 = pneg %p38
      %p236 = pneg %p35
      %p237 = pneg %p59
      %p238 = pneg %p56
      %p239 = pneg %p80
      %p240 = pneg %p77
      %p241 = pneg %p101
      %p242 = pneg %p98
      %p243 = pneg %p122
      %p244 = pneg %p119
      %s245 = smul.u32 13, %s17
      %p246 = scmp.lt.s32.totalorder %s245, 25
      %s247 = scalar_select %p246, %s245, 25
      %s248 = smul.addr %s247, 8
      %s249 = scalar_lea.vmem %s5, %s248
      %p250 = pneg %p148
      %p251 = pneg %p145
      %p252 = pneg %p174
      %p253 = pneg %p171
      %p254 = scmp.lt.s32.totalorder %s17, 1
      %s255 = scalar_select %p254, %s17, 1
      %s256 = scalar_lea.vmem %s6, %s255
      %s257 = smul.u32 13, %s17
      %p258 = scmp.lt.s32.totalorder %s257, 25
      %s259 = scalar_select %p258, %s257, 25
      %s260 = smul.addr %s259, 8
      %s261 = scalar_lea.vmem %s0, %s260
      %s262 = smul.u32 13, %s17
      %s263 = smul.u32 13, %s17
      %p264 = scmp.lt.s32.totalorder %s263, 25
      %s265 = scalar_select %p264, %s263, 25
      %s266 = smul.addr %s265, 8
      %s267 = scalar_lea.vmem %s5, %s266
      %s268 = smul.u32 13, %s17
      %p269 = scmp.lt.s32.totalorder %s17, 1
      %s270 = scalar_select %p269, %s17, 1
      %s271 = scalar_lea.vmem %s6, %s270
      %v273 = vld [vmem:[%s261] sm:$0xff]
      %v274 = vld [vmem:[%s261 + $0x8] sm:$0xff]
      %v275 = vld [vmem:[%s261 + $0x10] sm:$0xff]
      %v276 = vld [vmem:[%s261 + $0x18] sm:$0xff]
      %v277 = vld [vmem:[%s261 + $0x20] sm:$0xff]
      %v278 = vld [vmem:[%s261 + $0x28] sm:$0xff]
      %v279 = vld [vmem:[%s261 + $0x30] sm:$0xff]
      %v280 = vld [vmem:[%s261 + $0x38] sm:$0xff]
      %v281 = vld [vmem:[%s261 + $0x40] sm:$0xff]
      %v282 = vld [vmem:[%s261 + $0x48] sm:$0xff]
      %v283 = vld [vmem:[%s261 + $0x50] sm:$0xff]
      %v284 = vld [vmem:[%s261 + $0x58] sm:$0xff]
      %v285 = vld [vmem:[%s261 + $0x60] sm:$0xff]
      %v286 = vpack.c.bf16 %v274, %v273
      %v287 = vpack.c.bf16 %v276, %v275
      %v288 = vpack.c.bf16 %v278, %v277
      %v289 = vpack.c.bf16 %v280, %v279
      %v290 = vpack.c.bf16 %v282, %v281
      %v291 = vpack.c.bf16 %v284, %v283
      %v292 = vpack.c.bf16 %v285, %v285
      %v293 = vld [vmem:[%s1] sm:$0xf]
      %v294 = vld [vmem:[%s1 + $0x4] sm:$0xf]
      %v295 = vld [vmem:[%s1 + $0x8] sm:$0xf]
      %v296 = vld [vmem:[%s1 + $0xc] sm:$0xf]
      %v297 = vld [vmem:[%s2] sm:$0x1]
      %v299 = vlaneseq
      %v300 = vshrl.u32 %v299, 7
      %v301 = vsub.s32 0, %v300
      %v302 = vrot.slane %v297, %v301
      %v308 = vunpack.c.l.b16 %v293
      %v309 = vunpack.c.l.b16 %v294
      %v310 = vunpack.c.l.b16 %v295
      %v311 = vunpack.c.l.b16 %v296
      %v312 = vpack.c.b16 %v309, %v308
      %v313 = vpack.c.b16 %v311, %v310
      %vm316 = vcmask 261120
      %v318 = vsel %vm316, %v286, 0
      %v321 = vsel %vm316, %v287, 0
      %v324 = vsel %vm316, %v288, 0
      %v327 = vsel %vm316, %v289, 0
      %v330 = vsel %vm316, %v290, 0
      %v333 = vsel %vm316, %v291, 0
      %v336 = vsel %vm316, %v292, 0
      %338 = vmatprep.subr.bf16.mxu0 0
      %339 = vmatpush1.bf16.msra.mxu0 0
      %340 = vmatprep.subr.bf16.mxu0 0
      %341 = vmatpush1.bf16.msra.mxu0 0
      %342 = vmatprep.subr.bf16.mxu0 0
      %343 = vmatpush1.bf16.msra.mxu0 0
      %344 = vmatprep.subr.bf16.mxu0 0
      %345 = vmatpush1.bf16.msra.mxu0 0
      %346 = vmatprep.subr.bf16.mxu0 0
      %347 = vmatpush1.bf16.msra.mxu0 0
      %348 = vmatprep.subr.bf16.mxu0 0
      %349 = vmatpush1.bf16.msra.mxu0 0
      %350 = vmatprep.subr.bf16.mxu0 0
      %351 = vmatpush1.bf16.msra.mxu0 %v313
      %352 = vmatprep.subr.bf16.mxu0 0
      %353 = vmatpush1.bf16.msra.mxu0 %v312
      %354 = vmatprep.subr.bf16.mxu0 0
      %355 = vmatpush2.bf16.msra.mxu0 0
      %356 = vmatprep.subr.bf16.mxu0 0
      %357 = vmatpush2.bf16.msra.mxu0 0
      %358 = vmatprep.subr.bf16.mxu0 0
      %359 = vmatpush2.bf16.msra.mxu0 0
      %360 = vmatprep.subr.bf16.mxu0 0
      %361 = vmatpush2.bf16.msra.mxu0 0
      %362 = vmatprep.subr.bf16.mxu0 0
      %363 = vmatpush2.bf16.msra.mxu0 0
      %364 = vmatprep.subr.bf16.mxu0 0
      %365 = vmatpush2.bf16.msra.mxu0 0
      %366 = vmatprep.subr.bf16.mxu0 0
      %367 = vmatpush2.bf16.msra.mxu0 0
      %368 = vmatprep.subr.bf16.mxu0 0
      %369 = vmatpush2.bf16.msra.mxu0 0
      %370 = vmatprep.mubr.bf16.mxu0 0
      %371 = vmatmul.mubr.bf16.gmra.mxu0 %v318
      %v372 = vpop.f32.mrf.mxu0
      %v373 = vadd.f32 %v302, %v372
      %v374 = vpop.f32.mrf.mxu0
      %v375 = vpop.f32.mrf.mxu0
      %v376 = vadd.f32 %v302, %v375
      %v377 = vpop.f32.mrf.mxu0
      %378 = vmatprep.mubr.bf16.mxu0 0
      %379 = vmatmul.mubr.bf16.gmra.mxu0 %v321
      %v380 = vpop.f32.mrf.mxu0
      %v381 = vadd.f32 %v302, %v380
      %v382 = vpop.f32.mrf.mxu0
      %v383 = vpop.f32.mrf.mxu0
      %v384 = vadd.f32 %v302, %v383
      %v385 = vpop.f32.mrf.mxu0
      %386 = vmatprep.mubr.bf16.mxu0 0
      %387 = vmatmul.mubr.bf16.gmra.mxu0 %v324
      %v388 = vpop.f32.mrf.mxu0
      %v389 = vadd.f32 %v302, %v388
      %v390 = vpop.f32.mrf.mxu0
      %v391 = vpop.f32.mrf.mxu0
      %v392 = vadd.f32 %v302, %v391
      %v393 = vpop.f32.mrf.mxu0
      %394 = vmatprep.mubr.bf16.mxu0 0
      %395 = vmatmul.mubr.bf16.gmra.mxu0 %v327
      %v396 = vpop.f32.mrf.mxu0
      %v397 = vadd.f32 %v302, %v396
      %v398 = vpop.f32.mrf.mxu0
      %v399 = vpop.f32.mrf.mxu0
      %v400 = vadd.f32 %v302, %v399
      %v401 = vpop.f32.mrf.mxu0
      %402 = vmatprep.mubr.bf16.mxu0 0
      %403 = vmatmul.mubr.bf16.gmra.mxu0 %v330
      %v404 = vpop.f32.mrf.mxu0
      %v405 = vadd.f32 %v302, %v404
      %v406 = vpop.f32.mrf.mxu0
      %v407 = vpop.f32.mrf.mxu0
      %v408 = vadd.f32 %v302, %v407
      %v409 = vpop.f32.mrf.mxu0
      %410 = vmatprep.mubr.bf16.mxu0 0
      %411 = vmatmul.mubr.bf16.gmra.mxu0 %v333
      %v412 = vpop.f32.mrf.mxu0
      %v413 = vadd.f32 %v302, %v412
      %v414 = vpop.f32.mrf.mxu0
      %v415 = vpop.f32.mrf.mxu0
      %v416 = vadd.f32 %v302, %v415
      %v417 = vpop.f32.mrf.mxu0
      %418 = vmatprep.mubr.bf16.mxu0 0
      %419 = vmatmul.mubr.bf16.gmra.mxu0 %v336
      %v420 = vpop.f32.mrf.mxu0
      %v421 = vadd.f32 %v302, %v420
      %v422 = vpop.f32.mrf.mxu0
      %v423 = vpop.f32.mrf.mxu0
      %v424 = vpop.f32.mrf.mxu0
      %425 = vdwg.mxu0
      %v426 = vtanh.pop %v373
      %v427 = vtanh.pop %v376
      %v428 = vtanh.pop %v381
      %v429 = vtanh.pop %v384
      %v430 = vtanh.pop %v389
      %v431 = vtanh.pop %v392
      %v432 = vtanh.pop %v397
      %v433 = vtanh.pop %v400
      %v434 = vtanh.pop %v405
      %v435 = vtanh.pop %v408
      %v436 = vtanh.pop %v413
      %v437 = vtanh.pop %v416
      %v438 = vtanh.pop %v421
      %v439 = vld [vmem:[%s3] sm:$0xff]
      %v440 = vld [vmem:[%s3 + $0x8] sm:$0xff]
      %v441 = vld [vmem:[%s3 + $0x10] sm:$0xff]
      %v442 = vld [vmem:[%s3 + $0x18] sm:$0xff]
      %v443 = vld [vmem:[%s4] sm:$0x1]
      %v445 = vlaneseq
      %v446 = vshrl.u32 %v445, 7
      %v447 = vsub.s32 0, %v446
      %v448 = vrot.slane %v443, %v447
      %v451 = vsel %vm316, %v426, 0
      %v454 = vsel %vm316, %v427, 0
      %v457 = vsel %vm316, %v428, 0
      %v460 = vsel %vm316, %v429, 0
      %v463 = vsel %vm316, %v430, 0
      %v466 = vsel %vm316, %v431, 0
      %v469 = vsel %vm316, %v432, 0
      %v472 = vsel %vm316, %v433, 0
      %v475 = vsel %vm316, %v434, 0
      %v478 = vsel %vm316, %v435, 0
      %v481 = vsel %vm316, %v436, 0
      %v484 = vsel %vm316, %v437, 0
      %v487 = vsel %vm316, %v438, 0
      %489 = vmatprep.subr.mxu0 0.0
      %490 = vmatpush1.msra.mxu0 0.0
      %491 = vmatprep.subr.mxu0 0.0
      %492 = vmatpush1.msra.mxu0 0.0
      %493 = vmatprep.subr.mxu0 0.0
      %494 = vmatpush1.msra.mxu0 0.0
      %495 = vmatprep.subr.mxu0 0.0
      %496 = vmatpush1.msra.mxu0 0.0
      %497 = vmatprep.subr.mxu0 0.0
      %498 = vmatpush1.msra.mxu0 0.0
      %499 = vmatprep.subr.mxu0 0.0
      %500 = vmatpush1.msra.mxu0 0.0
      %501 = vmatprep.subr.mxu0 0.0
      %502 = vmatpush1.msra.mxu0 0.0
      %503 = vmatprep.subr.mxu0 0.0
      %504 = vmatpush1.msra.mxu0 0.0
      %505 = vmatprep.subr.mxu0 0.0
      %506 = vmatpush1.msra.mxu0 0.0
      %507 = vmatprep.subr.mxu0 0.0
      %508 = vmatpush1.msra.mxu0 0.0
      %509 = vmatprep.subr.mxu0 0.0
      %510 = vmatpush1.msra.mxu0 0.0
      %511 = vmatprep.subr.mxu0 0.0
      %512 = vmatpush1.msra.mxu0 0.0
      %513 = vmatprep.subr.mxu0 0.0
      %514 = vmatpush1.msra.mxu0 %v442
      %515 = vmatprep.subr.mxu0 0.0
      %516 = vmatpush1.msra.mxu0 %v441
      %517 = vmatprep.subr.mxu0 0.0
      %518 = vmatpush1.msra.mxu0 %v440
      %519 = vmatprep.subr.mxu0 0.0
      %520 = vmatpush1.msra.mxu0 %v439
      %521 = vmatprep.subr.mxu0 0.0
      %522 = vmatpush2.msra.mxu0 0.0
      %523 = vmatprep.subr.mxu0 0.0
      %524 = vmatpush2.msra.mxu0 0.0
      %525 = vmatprep.subr.mxu0 0.0
      %526 = vmatpush2.msra.mxu0 0.0
      %527 = vmatprep.subr.mxu0 0.0
      %528 = vmatpush2.msra.mxu0 0.0
      %529 = vmatprep.subr.mxu0 0.0
      %530 = vmatpush2.msra.mxu0 0.0
      %531 = vmatprep.subr.mxu0 0.0
      %532 = vmatpush2.msra.mxu0 0.0
      %533 = vmatprep.subr.mxu0 0.0
      %534 = vmatpush2.msra.mxu0 0.0
      %535 = vmatprep.subr.mxu0 0.0
      %536 = vmatpush2.msra.mxu0 0.0
      %537 = vmatprep.subr.mxu0 0.0
      %538 = vmatpush2.msra.mxu0 0.0
      %539 = vmatprep.subr.mxu0 0.0
      %540 = vmatpush2.msra.mxu0 0.0
      %541 = vmatprep.subr.mxu0 0.0
      %542 = vmatpush2.msra.mxu0 0.0
      %543 = vmatprep.subr.mxu0 0.0
      %544 = vmatpush2.msra.mxu0 0.0
      %545 = vmatprep.subr.mxu0 0.0
      %546 = vmatpush2.msra.mxu0 0.0
      %547 = vmatprep.subr.mxu0 0.0
      %548 = vmatpush2.msra.mxu0 0.0
      %549 = vmatprep.subr.mxu0 0.0
      %550 = vmatpush2.msra.mxu0 0.0
      %551 = vmatprep.subr.mxu0 0.0
      %552 = vmatpush2.msra.mxu0 0.0
      %553 = vmatprep.mubr.f32.mxu0 0.0
      %554 = vmatmul.mubr.f32.gmra.mxu0 %v451
      %v555 = vpop.f32.mrf.mxu0
      %v556 = vadd.f32 %v448, %v555
      %v557 = vpop.f32.mrf.mxu0
      %558 = vmatprep.mubr.f32.mxu0 0.0
      %559 = vmatmul.mubr.f32.gmra.mxu0 %v454
      %v560 = vpop.f32.mrf.mxu0
      %v561 = vadd.f32 %v448, %v560
      %v562 = vpop.f32.mrf.mxu0
      %563 = vmatprep.mubr.f32.mxu0 0.0
      %564 = vmatmul.mubr.f32.gmra.mxu0 %v457
      %v565 = vpop.f32.mrf.mxu0
      %v566 = vadd.f32 %v448, %v565
      %v567 = vpop.f32.mrf.mxu0
      %568 = vmatprep.mubr.f32.mxu0 0.0
      %569 = vmatmul.mubr.f32.gmra.mxu0 %v460
      %v570 = vpop.f32.mrf.mxu0
      %v571 = vadd.f32 %v448, %v570
      %v572 = vpop.f32.mrf.mxu0
      %573 = vmatprep.mubr.f32.mxu0 0.0
      %574 = vmatmul.mubr.f32.gmra.mxu0 %v463
      %v575 = vpop.f32.mrf.mxu0
      %v576 = vadd.f32 %v448, %v575
      %v577 = vpop.f32.mrf.mxu0
      %578 = vmatprep.mubr.f32.mxu0 0.0
      %579 = vmatmul.mubr.f32.gmra.mxu0 %v466
      %v580 = vpop.f32.mrf.mxu0
      %v581 = vadd.f32 %v448, %v580
      %v582 = vpop.f32.mrf.mxu0
      %583 = vmatprep.mubr.f32.mxu0 0.0
      %584 = vmatmul.mubr.f32.gmra.mxu0 %v469
      %v585 = vpop.f32.mrf.mxu0
      %v586 = vadd.f32 %v448, %v585
      %v587 = vpop.f32.mrf.mxu0
      %588 = vmatprep.mubr.f32.mxu0 0.0
      %589 = vmatmul.mubr.f32.gmra.mxu0 %v472
      %v590 = vpop.f32.mrf.mxu0
      %v591 = vadd.f32 %v448, %v590
      %v592 = vpop.f32.mrf.mxu0
      %593 = vmatprep.mubr.f32.mxu0 0.0
      %594 = vmatmul.mubr.f32.gmra.mxu0 %v475
      %v595 = vpop.f32.mrf.mxu0
      %v596 = vadd.f32 %v448, %v595
      %v597 = vpop.f32.mrf.mxu0
      %598 = vmatprep.mubr.f32.mxu0 0.0
      %599 = vmatmul.mubr.f32.gmra.mxu0 %v478
      %v600 = vpop.f32.mrf.mxu0
      %v601 = vadd.f32 %v448, %v600
      %v602 = vpop.f32.mrf.mxu0
      %603 = vmatprep.mubr.f32.mxu0 0.0
      %604 = vmatmul.mubr.f32.gmra.mxu0 %v481
      %v605 = vpop.f32.mrf.mxu0
      %v606 = vadd.f32 %v448, %v605
      %v607 = vpop.f32.mrf.mxu0
      %608 = vmatprep.mubr.f32.mxu0 0.0
      %609 = vmatmul.mubr.f32.gmra.mxu0 %v484
      %v610 = vpop.f32.mrf.mxu0
      %v611 = vadd.f32 %v448, %v610
      %v612 = vpop.f32.mrf.mxu0
      %613 = vmatprep.mubr.f32.mxu0 0.0
      %614 = vmatmul.mubr.f32.gmra.mxu0 %v487
      %v615 = vpop.f32.mrf.mxu0
      %v616 = vadd.f32 %v448, %v615
      %v617 = vpop.f32.mrf.mxu0
      %618 = vdwg.mxu0
      %vm619 = vcmask 64512
      %v620 = vsel %vm619, %v556, -inf
      %621 = vmax.xlane.f32.xlu0 %v620
      %v622 = vpop.xlane.xlu0 %621
      %v623 = vsel %vm619, %v561, -inf
      %624 = vmax.xlane.f32.xlu0 %v623
      %v625 = vpop.xlane.xlu0 %624
      %v626 = vsel %vm619, %v566, -inf
      %627 = vmax.xlane.f32.xlu0 %v626
      %v628 = vpop.xlane.xlu0 %627
      %v629 = vsel %vm619, %v571, -inf
      %630 = vmax.xlane.f32.xlu0 %v629
      %v631 = vpop.xlane.xlu0 %630
      %v632 = vsel %vm619, %v576, -inf
      %633 = vmax.xlane.f32.xlu0 %v632
      %v634 = vpop.xlane.xlu0 %633
      %v635 = vsel %vm619, %v581, -inf
      %636 = vmax.xlane.f32.xlu0 %v635
      %v637 = vpop.xlane.xlu0 %636
      %v638 = vsel %vm619, %v586, -inf
      %639 = vmax.xlane.f32.xlu0 %v638
      %v640 = vpop.xlane.xlu0 %639
      %v641 = vsel %vm619, %v591, -inf
      %642 = vmax.xlane.f32.xlu0 %v641
      %v643 = vpop.xlane.xlu0 %642
      %v644 = vsel %vm619, %v596, -inf
      %645 = vmax.xlane.f32.xlu0 %v644
      %v646 = vpop.xlane.xlu0 %645
      %v647 = vsel %vm619, %v601, -inf
      %648 = vmax.xlane.f32.xlu0 %v647
      %v649 = vpop.xlane.xlu0 %648
      %v650 = vsel %vm619, %v606, -inf
      %651 = vmax.xlane.f32.xlu0 %v650
      %v652 = vpop.xlane.xlu0 %651
      %v653 = vsel %vm619, %v611, -inf
      %654 = vmax.xlane.f32.xlu0 %v653
      %v655 = vpop.xlane.xlu0 %654
      %v656 = vsel %vm619, %v616, -inf
      %657 = vmax.xlane.f32.xlu0 %v656
      %v658 = vpop.xlane.xlu0 %657
      %v659 = vsub.f32 %v556, %v622
      %v660 = vsub.f32 %v561, %v625
      %v661 = vsub.f32 %v566, %v628
      %v662 = vsub.f32 %v571, %v631
      %v663 = vsub.f32 %v576, %v634
      %v664 = vsub.f32 %v581, %v637
      %v665 = vsub.f32 %v586, %v640
      %v666 = vsub.f32 %v591, %v643
      %v667 = vsub.f32 %v596, %v646
      %v668 = vsub.f32 %v601, %v649
      %v669 = vsub.f32 %v606, %v652
      %v670 = vsub.f32 %v611, %v655
      %v671 = vsub.f32 %v616, %v658
      %v672 = vmul.f32 %v659, 1.442695
      %v673 = vpow.pop %v672
      %v674 = vmul.f32 %v660, 1.442695
      %v675 = vpow.pop %v674
      %v676 = vmul.f32 %v661, 1.442695
      %v677 = vpow.pop %v676
      %v678 = vmul.f32 %v662, 1.442695
      %v679 = vpow.pop %v678
      %v680 = vmul.f32 %v663, 1.442695
      %v681 = vpow.pop %v680
      %v682 = vmul.f32 %v664, 1.442695
      %v683 = vpow.pop %v682
      %v684 = vmul.f32 %v665, 1.442695
      %v685 = vpow.pop %v684
      %v686 = vmul.f32 %v666, 1.442695
      %v687 = vpow.pop %v686
      %v688 = vmul.f32 %v667, 1.442695
      %v689 = vpow.pop %v688
      %v690 = vmul.f32 %v668, 1.442695
      %v691 = vpow.pop %v690
      %v692 = vmul.f32 %v669, 1.442695
      %v693 = vpow.pop %v692
      %v694 = vmul.f32 %v670, 1.442695
      %v695 = vpow.pop %v694
      %v696 = vmul.f32 %v671, 1.442695
      %v697 = vpow.pop %v696
      %v698 = vsel %vm619, %v673, 0.0
      %699 = vadd.xlane.f32.xlu0 %v698
      %v700 = vpop.xlane.xlu0 %699
      %v701 = vsel %vm619, %v675, 0.0
      %702 = vadd.xlane.f32.xlu0 %v701
      %v703 = vpop.xlane.xlu0 %702
      %v704 = vsel %vm619, %v677, 0.0
      %705 = vadd.xlane.f32.xlu0 %v704
      %v706 = vpop.xlane.xlu0 %705
      %v707 = vsel %vm619, %v679, 0.0
      %708 = vadd.xlane.f32.xlu0 %v707
      %v709 = vpop.xlane.xlu0 %708
      %v710 = vsel %vm619, %v681, 0.0
      %711 = vadd.xlane.f32.xlu0 %v710
      %v712 = vpop.xlane.xlu0 %711
      %v713 = vsel %vm619, %v683, 0.0
      %714 = vadd.xlane.f32.xlu0 %v713
      %v715 = vpop.xlane.xlu0 %714
      %v716 = vsel %vm619, %v685, 0.0
      %717 = vadd.xlane.f32.xlu0 %v716
      %v718 = vpop.xlane.xlu0 %717
      %v719 = vsel %vm619, %v687, 0.0
      %720 = vadd.xlane.f32.xlu0 %v719
      %v721 = vpop.xlane.xlu0 %720
      %v722 = vsel %vm619, %v689, 0.0
      %723 = vadd.xlane.f32.xlu0 %v722
      %v724 = vpop.xlane.xlu0 %723
      %v725 = vsel %vm619, %v691, 0.0
      %726 = vadd.xlane.f32.xlu0 %v725
      %v727 = vpop.xlane.xlu0 %726
      %v728 = vsel %vm619, %v693, 0.0
      %729 = vadd.xlane.f32.xlu0 %v728
      %v730 = vpop.xlane.xlu0 %729
      %v731 = vsel %vm619, %v695, 0.0
      %732 = vadd.xlane.f32.xlu0 %v731
      %v733 = vpop.xlane.xlu0 %732
      %v734 = vsel %vm619, %v697, 0.0
      %735 = vadd.xlane.f32.xlu0 %v734
      %v736 = vpop.xlane.xlu0 %735
      %v737 = vrcp.pop %v700
      %v738 = vmul.f32 %v673, %v737
      %v739 = vrcp.pop %v703
      %v740 = vmul.f32 %v675, %v739
      %v741 = vrcp.pop %v706
      %v742 = vmul.f32 %v677, %v741
      %v743 = vrcp.pop %v709
      %v744 = vmul.f32 %v679, %v743
      %v745 = vrcp.pop %v712
      %v746 = vmul.f32 %v681, %v745
      %v747 = vrcp.pop %v715
      %v748 = vmul.f32 %v683, %v747
      %v749 = vrcp.pop %v718
      %v750 = vmul.f32 %v685, %v749
      %v751 = vrcp.pop %v721
      %v752 = vmul.f32 %v687, %v751
      %v753 = vrcp.pop %v724
      %v754 = vmul.f32 %v689, %v753
      %v755 = vrcp.pop %v727
      %v756 = vmul.f32 %v691, %v755
      %v757 = vrcp.pop %v730
      %v758 = vmul.f32 %v693, %v757
      %v759 = vrcp.pop %v733
      %v760 = vmul.f32 %v695, %v759
      %v761 = vrcp.pop %v736
      %v762 = vmul.f32 %v697, %v761
      %v763 = vmul.f32 %v738, 1.442695
      %v764 = vpow.pop %v763
      %v765 = vmul.f32 %v740, 1.442695
      %v766 = vpow.pop %v765
      %v767 = vmul.f32 %v742, 1.442695
      %v768 = vpow.pop %v767
      %v769 = vmul.f32 %v744, 1.442695
      %v770 = vpow.pop %v769
      %v771 = vmul.f32 %v746, 1.442695
      %v772 = vpow.pop %v771
      %v773 = vmul.f32 %v748, 1.442695
      %v774 = vpow.pop %v773
      %v775 = vmul.f32 %v750, 1.442695
      %v776 = vpow.pop %v775
      %v777 = vmul.f32 %v752, 1.442695
      %v778 = vpow.pop %v777
      %v779 = vmul.f32 %v754, 1.442695
      %v780 = vpow.pop %v779
      %v781 = vmul.f32 %v756, 1.442695
      %v782 = vpow.pop %v781
      %v783 = vmul.f32 %v758, 1.442695
      %v784 = vpow.pop %v783
      %v785 = vmul.f32 %v760, 1.442695
      %v786 = vpow.pop %v785
      %v787 = vmul.f32 %v762, 1.442695
      %v788 = vpow.pop %v787
      %v789 = vsel %vm619, %v764, 0.0
      %790 = vadd.xlane.f32.xlu0 %v789
      %v791 = vpop.xlane.xlu0 %790
      %v792 = vsel %vm619, %v766, 0.0
      %793 = vadd.xlane.f32.xlu0 %v792
      %v794 = vpop.xlane.xlu0 %793
      %v795 = vsel %vm619, %v768, 0.0
      %796 = vadd.xlane.f32.xlu0 %v795
      %v797 = vpop.xlane.xlu0 %796
      %v798 = vsel %vm619, %v770, 0.0
      %799 = vadd.xlane.f32.xlu0 %v798
      %v800 = vpop.xlane.xlu0 %799
      %v801 = vsel %vm619, %v772, 0.0
      %802 = vadd.xlane.f32.xlu0 %v801
      %v803 = vpop.xlane.xlu0 %802
      %v804 = vsel %vm619, %v774, 0.0
      %805 = vadd.xlane.f32.xlu0 %v804
      %v806 = vpop.xlane.xlu0 %805
      %v807 = vsel %vm619, %v776, 0.0
      %808 = vadd.xlane.f32.xlu0 %v807
      %v809 = vpop.xlane.xlu0 %808
      %v810 = vsel %vm619, %v778, 0.0
      %811 = vadd.xlane.f32.xlu0 %v810
      %v812 = vpop.xlane.xlu0 %811
      %v813 = vsel %vm619, %v780, 0.0
      %814 = vadd.xlane.f32.xlu0 %v813
      %v815 = vpop.xlane.xlu0 %814
      %v816 = vsel %vm619, %v782, 0.0
      %817 = vadd.xlane.f32.xlu0 %v816
      %v818 = vpop.xlane.xlu0 %817
      %v819 = vsel %vm619, %v784, 0.0
      %820 = vadd.xlane.f32.xlu0 %v819
      %v821 = vpop.xlane.xlu0 %820
      %v822 = vsel %vm619, %v786, 0.0
      %823 = vadd.xlane.f32.xlu0 %v822
      %v824 = vpop.xlane.xlu0 %823
      %v825 = vsel %vm619, %v788, 0.0
      %826 = vadd.xlane.f32.xlu0 %v825
      %v827 = vpop.xlane.xlu0 %826
      %v828 = vlog2.pop %v791
      %v829 = vmul.f32 %v828, 0.6931472
      %v830 = vlog2.pop %v794
      %v831 = vmul.f32 %v830, 0.6931472
      %v832 = vlog2.pop %v797
      %v833 = vmul.f32 %v832, 0.6931472
      %v834 = vlog2.pop %v800
      %v835 = vmul.f32 %v834, 0.6931472
      %v836 = vlog2.pop %v803
      %v837 = vmul.f32 %v836, 0.6931472
      %v838 = vlog2.pop %v806
      %v839 = vmul.f32 %v838, 0.6931472
      %v840 = vlog2.pop %v809
      %v841 = vmul.f32 %v840, 0.6931472
      %v842 = vlog2.pop %v812
      %v843 = vmul.f32 %v842, 0.6931472
      %v844 = vlog2.pop %v815
      %v845 = vmul.f32 %v844, 0.6931472
      %v846 = vlog2.pop %v818
      %v847 = vmul.f32 %v846, 0.6931472
      %v848 = vlog2.pop %v821
      %v849 = vmul.f32 %v848, 0.6931472
      %v850 = vlog2.pop %v824
      %v851 = vmul.f32 %v850, 0.6931472
      %v852 = vlog2.pop %v827
      %v853 = vmul.f32 %v852, 0.6931472
      %v854 = vlaneseq
      %v855 = vand.u32 %v854, 127
      %v856 = vld [vmem:[%s267] sm:$0xff]
      %v857 = vld [vmem:[%s267 + $0x8] sm:$0xff]
      %v858 = vld [vmem:[%s267 + $0x10] sm:$0xff]
      %v859 = vld [vmem:[%s267 + $0x18] sm:$0xff]
      %v860 = vld [vmem:[%s267 + $0x20] sm:$0xff]
      %v861 = vld [vmem:[%s267 + $0x28] sm:$0xff]
      %v862 = vld [vmem:[%s267 + $0x30] sm:$0xff]
      %v863 = vld [vmem:[%s267 + $0x38] sm:$0xff]
      %v864 = vld [vmem:[%s267 + $0x40] sm:$0xff]
      %v865 = vld [vmem:[%s267 + $0x48] sm:$0xff]
      %v866 = vld [vmem:[%s267 + $0x50] sm:$0xff]
      %v867 = vld [vmem:[%s267 + $0x58] sm:$0xff]
      %v868 = vld [vmem:[%s267 + $0x60] sm:$0xff]
      %869 = vset.pattern.permute.xlu0 0
      %870 = vperm.xlu0 %869, %v856
      %v871 = vpop.permute.xlu0 %870
      %872 = vset.pattern.permute.xlu0 0
      %873 = vperm.xlu0 %872, %v857
      %v874 = vpop.permute.xlu0 %873
      %875 = vset.pattern.permute.xlu0 0
      %876 = vperm.xlu0 %875, %v858
      %v877 = vpop.permute.xlu0 %876
      %878 = vset.pattern.permute.xlu0 0
      %879 = vperm.xlu0 %878, %v859
      %v880 = vpop.permute.xlu0 %879
      %881 = vset.pattern.permute.xlu0 0
      %882 = vperm.xlu0 %881, %v860
      %v883 = vpop.permute.xlu0 %882
      %884 = vset.pattern.permute.xlu0 0
      %885 = vperm.xlu0 %884, %v861
      %v886 = vpop.permute.xlu0 %885
      %887 = vset.pattern.permute.xlu0 0
      %888 = vperm.xlu0 %887, %v862
      %v889 = vpop.permute.xlu0 %888
      %890 = vset.pattern.permute.xlu0 0
      %891 = vperm.xlu0 %890, %v863
      %v892 = vpop.permute.xlu0 %891
      %893 = vset.pattern.permute.xlu0 0
      %894 = vperm.xlu0 %893, %v864
      %v895 = vpop.permute.xlu0 %894
      %896 = vset.pattern.permute.xlu0 0
      %897 = vperm.xlu0 %896, %v865
      %v898 = vpop.permute.xlu0 %897
      %899 = vset.pattern.permute.xlu0 0
      %900 = vperm.xlu0 %899, %v866
      %v901 = vpop.permute.xlu0 %900
      %902 = vset.pattern.permute.xlu0 0
      %903 = vperm.xlu0 %902, %v867
      %v904 = vpop.permute.xlu0 %903
      %905 = vset.pattern.permute.xlu0 0
      %906 = vperm.xlu0 %905, %v868
      %v907 = vpop.permute.xlu0 %906
      %vm908 = vcmp.eq.s32.totalorder %v855, %v871
      %vm909 = vcmp.eq.s32.totalorder %v855, %v874
      %vm910 = vcmp.eq.s32.totalorder %v855, %v877
      %vm911 = vcmp.eq.s32.totalorder %v855, %v880
      %vm912 = vcmp.eq.s32.totalorder %v855, %v883
      %vm913 = vcmp.eq.s32.totalorder %v855, %v886
      %vm914 = vcmp.eq.s32.totalorder %v855, %v889
      %vm915 = vcmp.eq.s32.totalorder %v855, %v892
      %vm916 = vcmp.eq.s32.totalorder %v855, %v895
      %vm917 = vcmp.eq.s32.totalorder %v855, %v898
      %vm918 = vcmp.eq.s32.totalorder %v855, %v901
      %vm919 = vcmp.eq.s32.totalorder %v855, %v904
      %vm920 = vcmp.eq.s32.totalorder %v855, %v907
      %v921 = vsel %vm908, %v738, 0.0
      %v922 = vsel %vm909, %v740, 0.0
      %v923 = vsel %vm910, %v742, 0.0
      %v924 = vsel %vm911, %v744, 0.0
      %v925 = vsel %vm912, %v746, 0.0
      %v926 = vsel %vm913, %v748, 0.0
      %v927 = vsel %vm914, %v750, 0.0
      %v928 = vsel %vm915, %v752, 0.0
      %v929 = vsel %vm916, %v754, 0.0
      %v930 = vsel %vm917, %v756, 0.0
      %v931 = vsel %vm918, %v758, 0.0
      %v932 = vsel %vm919, %v760, 0.0
      %v933 = vsel %vm920, %v762, 0.0
      %v934 = vsel %vm619, %v921, 0.0
      %935 = vadd.xlane.f32.xlu0 %v934
      %v936 = vpop.xlane.xlu0 %935
      %v937 = vsel %vm619, %v922, 0.0
      %938 = vadd.xlane.f32.xlu0 %v937
      %v939 = vpop.xlane.xlu0 %938
      %v940 = vsel %vm619, %v923, 0.0
      %941 = vadd.xlane.f32.xlu0 %v940
      %v942 = vpop.xlane.xlu0 %941
      %v943 = vsel %vm619, %v924, 0.0
      %944 = vadd.xlane.f32.xlu0 %v943
      %v945 = vpop.xlane.xlu0 %944
      %v946 = vsel %vm619, %v925, 0.0
      %947 = vadd.xlane.f32.xlu0 %v946
      %v948 = vpop.xlane.xlu0 %947
      %v949 = vsel %vm619, %v926, 0.0
      %950 = vadd.xlane.f32.xlu0 %v949
      %v951 = vpop.xlane.xlu0 %950
      %v952 = vsel %vm619, %v927, 0.0
      %953 = vadd.xlane.f32.xlu0 %v952
      %v954 = vpop.xlane.xlu0 %953
      %v955 = vsel %vm619, %v928, 0.0
      %956 = vadd.xlane.f32.xlu0 %v955
      %v957 = vpop.xlane.xlu0 %956
      %v958 = vsel %vm619, %v929, 0.0
      %959 = vadd.xlane.f32.xlu0 %v958
      %v960 = vpop.xlane.xlu0 %959
      %v961 = vsel %vm619, %v930, 0.0
      %962 = vadd.xlane.f32.xlu0 %v961
      %v963 = vpop.xlane.xlu0 %962
      %v964 = vsel %vm619, %v931, 0.0
      %965 = vadd.xlane.f32.xlu0 %v964
      %v966 = vpop.xlane.xlu0 %965
      %v967 = vsel %vm619, %v932, 0.0
      %968 = vadd.xlane.f32.xlu0 %v967
      %v969 = vpop.xlane.xlu0 %968
      %v970 = vsel %vm619, %v933, 0.0
      %971 = vadd.xlane.f32.xlu0 %v970
      %v972 = vpop.xlane.xlu0 %971
      %v973 = vsub.f32 %v829, %v936
      %v974 = vsub.f32 %v831, %v939
      %v975 = vsub.f32 %v833, %v942
      %v976 = vsub.f32 %v835, %v945
      %v977 = vsub.f32 %v837, %v948
      %v978 = vsub.f32 %v839, %v951
      %v979 = vsub.f32 %v841, %v954
      %v980 = vsub.f32 %v843, %v957
      %v981 = vsub.f32 %v845, %v960
      %v982 = vsub.f32 %v847, %v963
      %v983 = vsub.f32 %v849, %v966
      %v984 = vsub.f32 %v851, %v969
      %v985 = vsub.f32 %v853, %v972
      %v986 = vlaneseq
      %v987 = vshrl.u32 %v986, 7
      %v988 = vadd.s32 %v987, 8
      %v989 = vadd.s32 %v987, 16
      %v990 = vadd.s32 %v987, 24
      %v991 = vadd.s32 %v987, 32
      %v992 = vadd.s32 %v987, 40
      %v993 = vadd.s32 %v987, 48
      %v994 = vadd.s32 %v987, 56
      %v995 = vadd.s32 %v987, 64
      %v996 = vadd.s32 %v987, 72
      %v997 = vadd.s32 %v987, 80
      %v998 = vadd.s32 %v987, 88
      %v999 = vadd.s32 %v987, 96
      %s1000 = smul.u32 %s17, 104
      %v1001 = vstv %s1000
      %v1002 = vadd.s32 %v987, %v1001
      %v1003 = vadd.s32 %v988, %v1001
      %v1004 = vadd.s32 %v989, %v1001
      %v1005 = vadd.s32 %v990, %v1001
      %v1006 = vadd.s32 %v991, %v1001
      %v1007 = vadd.s32 %v992, %v1001
      %v1008 = vadd.s32 %v993, %v1001
      %v1009 = vadd.s32 %v994, %v1001
      %v1010 = vadd.s32 %v995, %v1001
      %v1011 = vadd.s32 %v996, %v1001
      %v1012 = vadd.s32 %v997, %v1001
      %v1013 = vadd.s32 %v998, %v1001
      %v1014 = vadd.s32 %v999, %v1001
      %vm1015 = vcmp.lt.s32.totalorder %v1002, 200
      %vm1016 = vcmp.lt.s32.totalorder %v1003, 200
      %vm1017 = vcmp.lt.s32.totalorder %v1004, 200
      %vm1018 = vcmp.lt.s32.totalorder %v1005, 200
      %vm1019 = vcmp.lt.s32.totalorder %v1006, 200
      %vm1020 = vcmp.lt.s32.totalorder %v1007, 200
      %vm1021 = vcmp.lt.s32.totalorder %v1008, 200
      %vm1022 = vcmp.lt.s32.totalorder %v1009, 200
      %vm1023 = vcmp.lt.s32.totalorder %v1010, 200
      %vm1024 = vcmp.lt.s32.totalorder %v1011, 200
      %vm1025 = vcmp.lt.s32.totalorder %v1012, 200
      %vm1026 = vcmp.lt.s32.totalorder %v1013, 200
      %vm1027 = vcmp.lt.s32.totalorder %v1014, 200
      %v1028 = vsel %vm1015, %v973, 0.0
      %v1029 = vsel %vm1016, %v974, 0.0
      %v1030 = vsel %vm1017, %v975, 0.0
      %v1031 = vsel %vm1018, %v976, 0.0
      %v1032 = vsel %vm1019, %v977, 0.0
      %v1033 = vsel %vm1020, %v978, 0.0
      %v1034 = vsel %vm1021, %v979, 0.0
      %v1035 = vsel %vm1022, %v980, 0.0
      %v1036 = vsel %vm1023, %v981, 0.0
      %v1037 = vsel %vm1024, %v982, 0.0
      %v1038 = vsel %vm1025, %v983, 0.0
      %v1039 = vsel %vm1026, %v984, 0.0
      %v1040 = vsel %vm1027, %v985, 0.0
      %v1041 = vadd.f32 %v1028, %v1029
      %v1042 = vadd.f32 %v1041, %v1030
      %v1043 = vadd.f32 %v1042, %v1031
      %v1044 = vadd.f32 %v1043, %v1032
      %v1045 = vadd.f32 %v1044, %v1033
      %v1046 = vadd.f32 %v1045, %v1034
      %v1047 = vadd.f32 %v1046, %v1035
      %v1048 = vadd.f32 %v1047, %v1036
      %v1049 = vadd.f32 %v1048, %v1037
      %v1050 = vadd.f32 %v1049, %v1038
      %v1051 = vadd.f32 %v1050, %v1039
      %v1052 = vadd.f32 %v1051, %v1040
      %v1053 = vrot.slane %v1052, 4
      %v1054 = vadd.f32 %v1052, %v1053
      %v1055 = vrot.slane %v1054, 2
      %v1056 = vadd.f32 %v1054, %v1055
      %v1057 = vrot.slane %v1056, 1
      %v1058 = vadd.f32 %v1056, %v1057
      %vm1059 = vcmask 0
      %1060 = vst.msk [vmem:[%s271] sm:$0x1] %vm1059, %v1058
      %p1061 = scmp.lt.s32.totalorder %s17, 1
      %s1062 = scalar_select %p1061, %s17, 1
      %s1063 = scalar_lea.vmem %s6, %s1062
      // Predicated region
      $region45: #{tpu_custom_call.1} parent=43 // pred_check
        %p1064 = pneg %p171
      $region46: #{tpu_custom_call.1} parent=43 // pred_check_branch
        %1066 = sbr.rel (%p1064) target = $region48
      $region47: #{tpu_custom_call.1} parent=43 // pred_region
        _
      $region48: #{tpu_custom_call.1} parent=43 // pred_fallthru
        _
    $region44: #{tpu_custom_call.1} parent=5 // pred_fallthru
      _
    %p1067 = scmp.le.s32.totalorder 2, %s12
    // Predicated region
    $region49: #{tpu_custom_call.1} parent=5 // pred_check
      %p1068 = pneg %p1067
    $region50: #{tpu_custom_call.1} parent=5 // pred_check_branch
      %1070 = sbr.rel (%p1068) target = $region52
    $region51: #{tpu_custom_call.1} parent=5 // pred_region
      %s1071 = ssub.s32 %s12, 2
      // Predicated region
      $region53: #{tpu_custom_call.1} parent=51 // pred_check
        %p1072 = pneg %p177
      $region54: #{tpu_custom_call.1} parent=51 // pred_check_branch
        %1074 = sbr.rel (%p1072) target = $region56
      $region55: #{tpu_custom_call.1} parent=51 // pred_region
        %p1075 = scmp.lt.s32.totalorder %s18, 1
        %s1076 = scalar_select %p1075, %s18, 1
        %s1077 = scalar_lea.vmem %s6, %s1076
      $region56: #{tpu_custom_call.1} parent=51 // pred_fallthru
        _
    $region52: #{tpu_custom_call.1} parent=5 // pred_fallthru
      _
  $region6: #{tpu_custom_call.1} parent=0 // loop_footer
    %s16 = sadd.s32 1, %s12
  $region7: #{tpu_custom_call.1} parent=0 // loop_footer_branch
    %11 = sbr.rel target = $region3
  $region8: #{tpu_custom_call.1} parent=0 // loop_exit
    _

</llo_original>
